<compile_context>
chip_gen: v6e
topology: v6e:2x2x1
jax: 0.10.0
libtpu: 0.0.40
codegen_flags: <defaults>
</compile_context>

<pallas_src>
import functools
import math

import jax
import jax.numpy as jnp
from jax.experimental import pallas as pl
from jax.experimental.pallas import tpu as pltpu

KH = KW = 5
PAD = 2


def _conv5x5_kernel(x_ref, w_ref, m_ref, o_ref, *, width, use_relu):
    # x_ref: (1, Cin, H*W)        one NCHW sample, spatial flattened on lanes
    # w_ref: (Cout, KH*KW*Cin)    tap-major repacked weight (VMEM-resident)
    # m_ref: (KH*KW, H*W)         per-tap validity mask (VMEM-resident)
    # o_ref: (1, Cout, H*W)       lane-dense NCHW-flattened output
    c_in = x_ref.shape[1]
    hw = x_ref.shape[2]
    z = PAD * width + PAD                    # max |flat shift| = 2*W + 2

    x = x_ref[0]                                              # (Cin, HW)
    zeros = jnp.zeros((c_in, z), x.dtype)
    # Zero-extended flat buffer: xz[:, z + q] == x[:, q] for 0 <= q < HW,
    # and 0 outside.  Every tap is then a *static* lane slice of xz.
    xz = jnp.concatenate([zeros, x, zeros], axis=1)           # (Cin, HW+2z)

    shifted = []
    t = 0
    for kh in range(KH):                     # static unroll over the 25 taps
        for kw in range(KW):
            s = (kh - PAD) * width + (kw - PAD)               # flat shift
            sl = xz[:, z + s: z + s + hw]                     # x[:, p+s] or 0
            # Mask kills positions whose flat shift crossed a row boundary
            # (and, redundantly, out-of-image rows already zeroed by xz).
            shifted.append(sl * m_ref[t:t + 1, :])            # (Cin, HW)
            t += 1

    # In-kernel im2col: fold all 25 taps into one contraction of K = 25*Cin.
    patches = jnp.concatenate(shifted, axis=0)                # (25*Cin, HW)
    acc = jnp.dot(w_ref[...], patches,
                  preferred_element_type=jnp.float32)         # (Cout, HW)
    if use_relu:
        acc = jnp.maximum(acc, 0.0)
    o_ref[0] = acc.astype(o_ref.dtype)


@functools.partial(jax.jit, static_argnames=("use_relu",))
def conv2d_5x5_forward(x_nchw, w_oihw, *, use_relu=False):
    """5x5 'same' conv, stride 1, bias=False (conv2d_5x5 defaults)."""
    n, c_in, h, w = x_nchw.shape
    c_out, c_in_w, kh, kw = w_oihw.shape
    assert (kh, kw) == (KH, KW) and c_in_w == c_in, "expects a dense 5x5 kernel"
    hw = h * w

    # (N, Cin, H, W) -> (N, Cin, H*W): layout-preserving (trailing-dim merge,
    # no HBM copy).  Spatial on the 128-lane axis -> lane-dense loads/stores.
    x_flat = x_nchw.reshape(n, c_in, hw)

    # OIHW -> (Cout, KH*KW*Cin), tap-major to match the in-kernel im2col order.
    w_mat = jnp.transpose(w_oihw, (0, 2, 3, 1)).reshape(c_out, KH * KW * c_in)

    # Per-tap validity mask (constant, computed/folded at trace time, resident
    # in VMEM): 1 where output pixel p sees an in-image input pixel for that
    # tap, 0 where the 'same' padding contributes a zero.
    rows = jnp.arange(hw, dtype=jnp.int32) // w
    cols = jnp.arange(hw, dtype=jnp.int32) % w
    taps = []
    for kh_ in range(KH):
        for kw_ in range(KW):
            dh, dw = kh_ - PAD, kw_ - PAD
            valid = ((rows + dh >= 0) & (rows + dh < h) &
                     (cols + dw >= 0) & (cols + dw < w))
            taps.append(valid)
    mask = jnp.stack(taps).astype(x_nchw.dtype)               # (25, HW)

    kernel = functools.partial(_conv5x5_kernel, width=w, use_relu=use_relu)
    out_flat = pl.pallas_call(
        kernel,
        out_shape=jax.ShapeDtypeStruct((n, c_out, hw), x_nchw.dtype),
        grid_spec=pltpu.PrefetchScalarGridSpec(
            num_scalar_prefetch=0,
            grid=(n,),
            in_specs=[
                # One flattened sample per grid step (pipelined).
                pl.BlockSpec((1, c_in, hw), lambda i: (i, 0, 0)),
                # Weight: constant index_map -> fetched once, VMEM-resident.
                pl.BlockSpec((c_out, KH * KW * c_in), lambda i: (0, 0)),
                # Tap mask: constant index_map -> fetched once, VMEM-resident.
                pl.BlockSpec((KH * KW, hw), lambda i: (0, 0)),
            ],
            out_specs=pl.BlockSpec((1, c_out, hw), lambda i: (i, 0, 0)),
        ),
        compiler_params=pltpu.CompilerParams(
            dimension_semantics=("parallel",)),  # v7x: shard batch over 2 TCs
    )(x_flat, w_mat, mask)

    # (N, Cout, H*W) -> (N, Cout, H, W): trailing-dim split, no HBM copy.
    return out_flat.reshape(n, c_out, h, w)


def reference_forward(x_nchw, w_oihw, *, use_relu=False):
    """Pure-JAX reference mirroring the PyTorch conv2d_5x5 forward."""
    out = jax.lax.conv_general_dilated(
        x_nchw.astype(jnp.float32), w_oihw.astype(jnp.float32),
        window_strides=(1, 1), padding=((PAD, PAD), (PAD, PAD)),
        dimension_numbers=("NCHW", "OIHW", "NCHW"))
    if use_relu:
        out = jnp.maximum(out, 0.0)
    return out


if __name__ == "__main__":
    # Small shapes consistent with the module: NCHW input, 5x5 same conv.
    N, C_IN, H, W = 2, 4, 16, 16
    C_OUT = 8

    key = jax.random.PRNGKey(0)
    kx, kw_key = jax.random.split(key)
    x = jax.random.normal(kx, (N, C_IN, H, W), jnp.float32)        # NCHW
    # PyTorch Conv2d default init bound: 1/sqrt(fan_in), fan_in = Cin*5*5.
    bound = 1.0 / math.sqrt(C_IN * KH * KW)
    w_oihw = jax.random.uniform(kw_key, (C_OUT, C_IN, KH, KW), jnp.float32,
                                -bound, bound)

    out = conv2d_5x5_forward(x, w_oihw)
    out = jax.block_until_ready(out)

    ref = reference_forward(x, w_oihw)
    assert out.shape == (N, C_OUT, H, W), out.shape
    assert jnp.allclose(out, ref, atol=1e-4, rtol=1e-4), "mismatch vs reference"

    print("KERNEL_OK")
</pallas_src>

<mosaic_0001>
module attributes {stable_mosaic.version = 11 : i64} {
  func.func @_conv5x5_kernel(%arg0: i32, %arg1: memref<1x4x256xf32, #tpu.memory_space<vmem>>, %arg2: memref<8x100xf32, #tpu.memory_space<vmem>>, %arg3: memref<25x256xf32, #tpu.memory_space<vmem>>, %arg4: memref<1x8x256xf32, #tpu.memory_space<vmem>>) attributes {dimension_semantics = [#tpu.dimension_semantics<parallel>], iteration_bounds = array<i64: 2>, scalar_prefetch = 0 : i64, scratch_operands = 0 : i64, tpu.core_type = #tpu.core_type<tc>, window_params = [{transform_indices = @transform_0, window_bounds = array<i64: 1, 4, 256>}, {pipeline_mode = #tpu.pipeline_mode<synchronous>, transform_indices = @transform_1, window_bounds = array<i64: 8, 100>}, {pipeline_mode = #tpu.pipeline_mode<synchronous>, transform_indices = @transform_2, window_bounds = array<i64: 25, 256>}, {transform_indices = @transform_3, window_bounds = array<i64: 1, 8, 256>}]} {
    %c0 = arith.constant 0 : index
    %c0_0 = arith.constant 0 : index
    %c0_1 = arith.constant 0 : index
    %0 = vector.load %arg1[%c0, %c0_0, %c0_1] : memref<1x4x256xf32, #tpu.memory_space<vmem>>, vector<1x4x256xf32>
    %1 = vector.shape_cast %0 : vector<1x4x256xf32> to vector<4x256xf32>
    %cst = arith.constant 0.000000e+00 : f32
    %2 = vector.broadcast %cst : f32 to vector<4x34xf32>
    %3 = tpu.concatenate %2, %1, %2 in 1 : vector<4x34xf32>, vector<4x256xf32>, vector<4x34xf32> -> vector<4x324xf32>
    %4 = vector.extract_strided_slice %3 {offsets = [0, 0], sizes = [4, 256], strides = [1, 1]} : vector<4x324xf32> to vector<4x256xf32>
    %c0_2 = arith.constant 0 : index
    %c0_3 = arith.constant 0 : index
    %5 = vector.load %arg3[%c0_2, %c0_3] : memref<25x256xf32, #tpu.memory_space<vmem>>, vector<1x256xf32>
    %6 = vector.broadcast %5 : vector<1x256xf32> to vector<4x256xf32>
    %7 = arith.mulf %4, %6 : vector<4x256xf32>
    %8 = vector.extract_strided_slice %3 {offsets = [0, 1], sizes = [4, 256], strides = [1, 1]} : vector<4x324xf32> to vector<4x256xf32>
    %c1 = arith.constant 1 : index
    %c0_4 = arith.constant 0 : index
    %9 = vector.load %arg3[%c1, %c0_4] : memref<25x256xf32, #tpu.memory_space<vmem>>, vector<1x256xf32>
    %10 = vector.broadcast %9 : vector<1x256xf32> to vector<4x256xf32>
    %11 = arith.mulf %8, %10 : vector<4x256xf32>
    %12 = vector.extract_strided_slice %3 {offsets = [0, 2], sizes = [4, 256], strides = [1, 1]} : vector<4x324xf32> to vector<4x256xf32>
    %c2 = arith.constant 2 : index
    %c0_5 = arith.constant 0 : index
    %13 = vector.load %arg3[%c2, %c0_5] : memref<25x256xf32, #tpu.memory_space<vmem>>, vector<1x256xf32>
    %14 = vector.broadcast %13 : vector<1x256xf32> to vector<4x256xf32>
    %15 = arith.mulf %12, %14 : vector<4x256xf32>
    %16 = vector.extract_strided_slice %3 {offsets = [0, 3], sizes = [4, 256], strides = [1, 1]} : vector<4x324xf32> to vector<4x256xf32>
    %c3 = arith.constant 3 : index
    %c0_6 = arith.constant 0 : index
    %17 = vector.load %arg3[%c3, %c0_6] : memref<25x256xf32, #tpu.memory_space<vmem>>, vector<1x256xf32>
    %18 = vector.broadcast %17 : vector<1x256xf32> to vector<4x256xf32>
    %19 = arith.mulf %16, %18 : vector<4x256xf32>
    %20 = vector.extract_strided_slice %3 {offsets = [0, 4], sizes = [4, 256], strides = [1, 1]} : vector<4x324xf32> to vector<4x256xf32>
    %c4 = arith.constant 4 : index
    %c0_7 = arith.constant 0 : index
    %21 = vector.load %arg3[%c4, %c0_7] : memref<25x256xf32, #tpu.memory_space<vmem>>, vector<1x256xf32>
    %22 = vector.broadcast %21 : vector<1x256xf32> to vector<4x256xf32>
    %23 = arith.mulf %20, %22 : vector<4x256xf32>
    %24 = vector.extract_strided_slice %3 {offsets = [0, 16], sizes = [4, 256], strides = [1, 1]} : vector<4x324xf32> to vector<4x256xf32>
    %c5 = arith.constant 5 : index
    %c0_8 = arith.constant 0 : index
    %25 = vector.load %arg3[%c5, %c0_8] : memref<25x256xf32, #tpu.memory_space<vmem>>, vector<1x256xf32>
    %26 = vector.broadcast %25 : vector<1x256xf32> to vector<4x256xf32>
    %27 = arith.mulf %24, %26 : vector<4x256xf32>
    %28 = vector.extract_strided_slice %3 {offsets = [0, 17], sizes = [4, 256], strides = [1, 1]} : vector<4x324xf32> to vector<4x256xf32>
    %c6 = arith.constant 6 : index
    %c0_9 = arith.constant 0 : index
    %29 = vector.load %arg3[%c6, %c0_9] : memref<25x256xf32, #tpu.memory_space<vmem>>, vector<1x256xf32>
    %30 = vector.broadcast %29 : vector<1x256xf32> to vector<4x256xf32>
    %31 = arith.mulf %28, %30 : vector<4x256xf32>
    %32 = vector.extract_strided_slice %3 {offsets = [0, 18], sizes = [4, 256], strides = [1, 1]} : vector<4x324xf32> to vector<4x256xf32>
    %c7 = arith.constant 7 : index
    %c0_10 = arith.constant 0 : index
    %33 = vector.load %arg3[%c7, %c0_10] : memref<25x256xf32, #tpu.memory_space<vmem>>, vector<1x256xf32>
    %34 = vector.broadcast %33 : vector<1x256xf32> to vector<4x256xf32>
    %35 = arith.mulf %32, %34 : vector<4x256xf32>
    %36 = vector.extract_strided_slice %3 {offsets = [0, 19], sizes = [4, 256], strides = [1, 1]} : vector<4x324xf32> to vector<4x256xf32>
    %c8 = arith.constant 8 : index
    %c0_11 = arith.constant 0 : index
    %37 = vector.load %arg3[%c8, %c0_11] : memref<25x256xf32, #tpu.memory_space<vmem>>, vector<1x256xf32>
    %38 = vector.broadcast %37 : vector<1x256xf32> to vector<4x256xf32>
    %39 = arith.mulf %36, %38 : vector<4x256xf32>
    %40 = vector.extract_strided_slice %3 {offsets = [0, 20], sizes = [4, 256], strides = [1, 1]} : vector<4x324xf32> to vector<4x256xf32>
    %c9 = arith.constant 9 : index
    %c0_12 = arith.constant 0 : index
    %41 = vector.load %arg3[%c9, %c0_12] : memref<25x256xf32, #tpu.memory_space<vmem>>, vector<1x256xf32>
    %42 = vector.broadcast %41 : vector<1x256xf32> to vector<4x256xf32>
    %43 = arith.mulf %40, %42 : vector<4x256xf32>
    %44 = vector.extract_strided_slice %3 {offsets = [0, 32], sizes = [4, 256], strides = [1, 1]} : vector<4x324xf32> to vector<4x256xf32>
    %c10 = arith.constant 10 : index
    %c0_13 = arith.constant 0 : index
    %45 = vector.load %arg3[%c10, %c0_13] : memref<25x256xf32, #tpu.memory_space<vmem>>, vector<1x256xf32>
    %46 = vector.broadcast %45 : vector<1x256xf32> to vector<4x256xf32>
    %47 = arith.mulf %44, %46 : vector<4x256xf32>
    %48 = vector.extract_strided_slice %3 {offsets = [0, 33], sizes = [4, 256], strides = [1, 1]} : vector<4x324xf32> to vector<4x256xf32>
    %c11 = arith.constant 11 : index
    %c0_14 = arith.constant 0 : index
    %49 = vector.load %arg3[%c11, %c0_14] : memref<25x256xf32, #tpu.memory_space<vmem>>, vector<1x256xf32>
    %50 = vector.broadcast %49 : vector<1x256xf32> to vector<4x256xf32>
    %51 = arith.mulf %48, %50 : vector<4x256xf32>
    %52 = vector.extract_strided_slice %3 {offsets = [0, 34], sizes = [4, 256], strides = [1, 1]} : vector<4x324xf32> to vector<4x256xf32>
    %c12 = arith.constant 12 : index
    %c0_15 = arith.constant 0 : index
    %53 = vector.load %arg3[%c12, %c0_15] : memref<25x256xf32, #tpu.memory_space<vmem>>, vector<1x256xf32>
    %54 = vector.broadcast %53 : vector<1x256xf32> to vector<4x256xf32>
    %55 = arith.mulf %52, %54 : vector<4x256xf32>
    %56 = vector.extract_strided_slice %3 {offsets = [0, 35], sizes = [4, 256], strides = [1, 1]} : vector<4x324xf32> to vector<4x256xf32>
    %c13 = arith.constant 13 : index
    %c0_16 = arith.constant 0 : index
    %57 = vector.load %arg3[%c13, %c0_16] : memref<25x256xf32, #tpu.memory_space<vmem>>, vector<1x256xf32>
    %58 = vector.broadcast %57 : vector<1x256xf32> to vector<4x256xf32>
    %59 = arith.mulf %56, %58 : vector<4x256xf32>
    %60 = vector.extract_strided_slice %3 {offsets = [0, 36], sizes = [4, 256], strides = [1, 1]} : vector<4x324xf32> to vector<4x256xf32>
    %c14 = arith.constant 14 : index
    %c0_17 = arith.constant 0 : index
    %61 = vector.load %arg3[%c14, %c0_17] : memref<25x256xf32, #tpu.memory_space<vmem>>, vector<1x256xf32>
    %62 = vector.broadcast %61 : vector<1x256xf32> to vector<4x256xf32>
    %63 = arith.mulf %60, %62 : vector<4x256xf32>
    %64 = vector.extract_strided_slice %3 {offsets = [0, 48], sizes = [4, 256], strides = [1, 1]} : vector<4x324xf32> to vector<4x256xf32>
    %c15 = arith.constant 15 : index
    %c0_18 = arith.constant 0 : index
    %65 = vector.load %arg3[%c15, %c0_18] : memref<25x256xf32, #tpu.memory_space<vmem>>, vector<1x256xf32>
    %66 = vector.broadcast %65 : vector<1x256xf32> to vector<4x256xf32>
    %67 = arith.mulf %64, %66 : vector<4x256xf32>
    %68 = vector.extract_strided_slice %3 {offsets = [0, 49], sizes = [4, 256], strides = [1, 1]} : vector<4x324xf32> to vector<4x256xf32>
    %c16 = arith.constant 16 : index
    %c0_19 = arith.constant 0 : index
    %69 = vector.load %arg3[%c16, %c0_19] : memref<25x256xf32, #tpu.memory_space<vmem>>, vector<1x256xf32>
    %70 = vector.broadcast %69 : vector<1x256xf32> to vector<4x256xf32>
    %71 = arith.mulf %68, %70 : vector<4x256xf32>
    %72 = vector.extract_strided_slice %3 {offsets = [0, 50], sizes = [4, 256], strides = [1, 1]} : vector<4x324xf32> to vector<4x256xf32>
    %c17 = arith.constant 17 : index
    %c0_20 = arith.constant 0 : index
    %73 = vector.load %arg3[%c17, %c0_20] : memref<25x256xf32, #tpu.memory_space<vmem>>, vector<1x256xf32>
    %74 = vector.broadcast %73 : vector<1x256xf32> to vector<4x256xf32>
    %75 = arith.mulf %72, %74 : vector<4x256xf32>
    %76 = vector.extract_strided_slice %3 {offsets = [0, 51], sizes = [4, 256], strides = [1, 1]} : vector<4x324xf32> to vector<4x256xf32>
    %c18 = arith.constant 18 : index
    %c0_21 = arith.constant 0 : index
    %77 = vector.load %arg3[%c18, %c0_21] : memref<25x256xf32, #tpu.memory_space<vmem>>, vector<1x256xf32>
    %78 = vector.broadcast %77 : vector<1x256xf32> to vector<4x256xf32>
    %79 = arith.mulf %76, %78 : vector<4x256xf32>
    %80 = vector.extract_strided_slice %3 {offsets = [0, 52], sizes = [4, 256], strides = [1, 1]} : vector<4x324xf32> to vector<4x256xf32>
    %c19 = arith.constant 19 : index
    %c0_22 = arith.constant 0 : index
    %81 = vector.load %arg3[%c19, %c0_22] : memref<25x256xf32, #tpu.memory_space<vmem>>, vector<1x256xf32>
    %82 = vector.broadcast %81 : vector<1x256xf32> to vector<4x256xf32>
    %83 = arith.mulf %80, %82 : vector<4x256xf32>
    %84 = vector.extract_strided_slice %3 {offsets = [0, 64], sizes = [4, 256], strides = [1, 1]} : vector<4x324xf32> to vector<4x256xf32>
    %c20 = arith.constant 20 : index
    %c0_23 = arith.constant 0 : index
    %85 = vector.load %arg3[%c20, %c0_23] : memref<25x256xf32, #tpu.memory_space<vmem>>, vector<1x256xf32>
    %86 = vector.broadcast %85 : vector<1x256xf32> to vector<4x256xf32>
    %87 = arith.mulf %84, %86 : vector<4x256xf32>
    %88 = vector.extract_strided_slice %3 {offsets = [0, 65], sizes = [4, 256], strides = [1, 1]} : vector<4x324xf32> to vector<4x256xf32>
    %c21 = arith.constant 21 : index
    %c0_24 = arith.constant 0 : index
    %89 = vector.load %arg3[%c21, %c0_24] : memref<25x256xf32, #tpu.memory_space<vmem>>, vector<1x256xf32>
    %90 = vector.broadcast %89 : vector<1x256xf32> to vector<4x256xf32>
    %91 = arith.mulf %88, %90 : vector<4x256xf32>
    %92 = vector.extract_strided_slice %3 {offsets = [0, 66], sizes = [4, 256], strides = [1, 1]} : vector<4x324xf32> to vector<4x256xf32>
    %c22 = arith.constant 22 : index
    %c0_25 = arith.constant 0 : index
    %93 = vector.load %arg3[%c22, %c0_25] : memref<25x256xf32, #tpu.memory_space<vmem>>, vector<1x256xf32>
    %94 = vector.broadcast %93 : vector<1x256xf32> to vector<4x256xf32>
    %95 = arith.mulf %92, %94 : vector<4x256xf32>
    %96 = vector.extract_strided_slice %3 {offsets = [0, 67], sizes = [4, 256], strides = [1, 1]} : vector<4x324xf32> to vector<4x256xf32>
    %c23 = arith.constant 23 : index
    %c0_26 = arith.constant 0 : index
    %97 = vector.load %arg3[%c23, %c0_26] : memref<25x256xf32, #tpu.memory_space<vmem>>, vector<1x256xf32>
    %98 = vector.broadcast %97 : vector<1x256xf32> to vector<4x256xf32>
    %99 = arith.mulf %96, %98 : vector<4x256xf32>
    %100 = vector.extract_strided_slice %3 {offsets = [0, 68], sizes = [4, 256], strides = [1, 1]} : vector<4x324xf32> to vector<4x256xf32>
    %c24 = arith.constant 24 : index
    %c0_27 = arith.constant 0 : index
    %101 = vector.load %arg3[%c24, %c0_27] : memref<25x256xf32, #tpu.memory_space<vmem>>, vector<1x256xf32>
    %102 = vector.broadcast %101 : vector<1x256xf32> to vector<4x256xf32>
    %103 = arith.mulf %100, %102 : vector<4x256xf32>
    %104 = tpu.concatenate %7, %11, %15, %19, %23, %27, %31, %35, %39, %43, %47, %51, %55, %59, %63, %67 in 0 : vector<4x256xf32>, vector<4x256xf32>, vector<4x256xf32>, vector<4x256xf32>, vector<4x256xf32>, vector<4x256xf32>, vector<4x256xf32>, vector<4x256xf32>, vector<4x256xf32>, vector<4x256xf32>, vector<4x256xf32>, vector<4x256xf32>, vector<4x256xf32>, vector<4x256xf32>, vector<4x256xf32>, vector<4x256xf32> -> vector<64x256xf32>
    %105 = tpu.concatenate %71, %75, %79, %83, %87, %91, %95, %99, %103 in 0 : vector<4x256xf32>, vector<4x256xf32>, vector<4x256xf32>, vector<4x256xf32>, vector<4x256xf32>, vector<4x256xf32>, vector<4x256xf32>, vector<4x256xf32>, vector<4x256xf32> -> vector<36x256xf32>
    %106 = tpu.concatenate %104, %105 in 0 : vector<64x256xf32>, vector<36x256xf32> -> vector<100x256xf32>
    %c0_28 = arith.constant 0 : index
    %c0_29 = arith.constant 0 : index
    %107 = vector.load %arg2[%c0_28, %c0_29] : memref<8x100xf32, #tpu.memory_space<vmem>>, vector<8x100xf32>
    %cst_30 = arith.constant dense<0.000000e+00> : vector<8x256xf32>
    %108 = tpu.matmul %107, %106, %cst_30 {dimension_numbers = #tpu.dot_dimension_numbers<[1], [0], [0], [1], [0, 0, 1, 1], [], []>} : vector<8x100xf32>, vector<100x256xf32>, vector<8x256xf32> -> vector<8x256xf32>
    %c0_31 = arith.constant 0 : index
    %c0_32 = arith.constant 0 : index
    %c0_33 = arith.constant 0 : index
    %109 = vector.load %arg4[%c0_31, %c0_32, %c0_33] : memref<1x8x256xf32, #tpu.memory_space<vmem>>, vector<1x8x256xf32>
    %110 = vector.shape_cast %109 : vector<1x8x256xf32> to vector<8x256xf32>
    %111 = vector.shape_cast %108 : vector<8x256xf32> to vector<1x8x256xf32>
    tpu.vector_store %arg4[%c0_31, %c0_32, %c0_33], %111 {strides = array<i32>} : memref<1x8x256xf32, #tpu.memory_space<vmem>>, vector<1x8x256xf32>,
    return
  }
  func.func @transform_0(%arg0: i32) -> (i32, i32, i32) {
    %c0_i32 = arith.constant 0 : i32
    %c0_i32_0 = arith.constant 0 : i32
    %c0_i32_1 = arith.constant 0 : i32
    return %arg0, %c0_i32, %c0_i32_0 : i32, i32, i32
  }
  func.func @transform_1(%arg0: i32) -> (i32, i32) {
    %c0_i32 = arith.constant 0 : i32
    %c0_i32_0 = arith.constant 0 : i32
    %c0_i32_1 = arith.constant 0 : i32
    return %c0_i32, %c0_i32_0 : i32, i32
  }
  func.func @transform_2(%arg0: i32) -> (i32, i32) {
    %c0_i32 = arith.constant 0 : i32
    %c0_i32_0 = arith.constant 0 : i32
    %c0_i32_1 = arith.constant 0 : i32
    return %c0_i32, %c0_i32_0 : i32, i32
  }
  func.func @transform_3(%arg0: i32) -> (i32, i32, i32) {
    %c0_i32 = arith.constant 0 : i32
    %c0_i32_0 = arith.constant 0 : i32
    %c0_i32_1 = arith.constant 0 : i32
    return %arg0, %c0_i32, %c0_i32_0 : i32, i32, i32
  }
}

</mosaic_0001>

<llo_original>
// kernel: conv2d_5x5_forward.1
$region0: #{conv2d_5x5_forward.1}
  #allocation0 [shape = 'u32[]', space=smem, size = 0x4, offset = 0x4, fixed_abs, tag = 'smem constant byte address 0x4 - core index']
  #allocation1 [shape = 'u32[144,128]{1,0:T(1,128)}', space=vmem, size = 0x12000, scoped, tag = 'internal scratch']
  %s0 = inlined_call_operand.vmem [shape: f32[2,4,256], index: 0, kind: input, shape index: {}]
  %s1 = inlined_call_operand.vmem [shape: f32[8,100], index: 1, kind: input, shape index: {}]
  %s2 = inlined_call_operand.vmem [shape: f32[25,256], index: 2, kind: input, shape index: {}]
  %s3 = inlined_call_operand.vmem [shape: f32[2,8,256], index: 3, kind: output, shape index: {}]
  %s4 = sld [smem:[#allocation0]]
  $region45: #{conv2d_5x5_forward.1} parent=0
    _
  %s6 = ssub.s32 1, %s4
  %s7 = scalar_select 0, %s6, %s4
  loop: start=0, step=1, limit=4
  $region2: #{conv2d_5x5_forward.1} parent=0 // loop_pre_header
    _
  $region3: #{conv2d_5x5_forward.1} parent=0 // loop_header
    %s9 = sphi 0, %s13
    %p10 = scmp.ge.s32.totalorder %s9, 4
    %s19 = sphi 0, %s21
    %s22 = sphi 0, %s19
    %s23 = sphi 0, %s22
    %s39 = sphi 0, %s23
    %s43 = sphi 0, %s43
    %s45 = sphi 0, %s43
    %s46 = sphi 0, %s45
    %s60 = sphi 0, %s46
    %s64 = sphi 0, %s64
    %s66 = sphi 0, %s64
    %s67 = sphi 0, %s66
    %s81 = sphi 0, %s67
    %s87 = sphi 0, %s89
    %s90 = sphi 0, %s87
    %s91 = sphi 0, %s90
    %s107 = sphi 0, %s91
  $region4: #{conv2d_5x5_forward.1} parent=0 // loop_header_branch
    %12 = sbr.rel (%p10) target = $region8
  $region5: #{conv2d_5x5_forward.1} parent=0 // loop_body
    %s14 = ssub.s32 %s9, 1
    %s15 = ssub.s32 %s9, 2
    %s16 = sadd.s32 %s9, 1
    %s17 = ssub.s32 %s9, %s16
    %p18 = scmp.eq.s32.totalorder %s17, 0
    %s20 = sadd.s32 %s19, 1
    %s21 = scalar_select %p18, %s19, %s20
    %p24 = pneg %p18
    %p25 = scmp.eq.s32.totalorder %s9, 1
    %p26 = por %p24, %p25
    %p27 = scmp.ne.s32.totalorder %s19, %s22
    %p28 = scmp.eq.s32.totalorder %s9, 0
    %p29 = por %p27, %p28
    %p30 = scmp.ne.s32.totalorder %s19, %s22
    %p31 = scmp.eq.s32.totalorder %s14, 1
    %p32 = por %p30, %p31
    %p33 = scmp.ne.s32.totalorder %s22, %s23
    %p34 = scmp.eq.s32.totalorder %s14, 0
    %p35 = por %p33, %p34
    %p36 = scmp.ne.s32.totalorder %s22, %s23
    %p37 = scmp.eq.s32.totalorder %s15, 1
    %p38 = por %p36, %p37
    %p40 = scmp.ne.s32.totalorder %s23, %s39
    %p41 = scmp.eq.s32.totalorder %s15, 0
    %p42 = por %p40, %p41
    %s44 = sadd.s32 %s43, 1
    %p47 = scmp.eq.s32.totalorder %s9, 1
    %p48 = scmp.ne.s32.totalorder %s43, %s45
    %p49 = scmp.eq.s32.totalorder %s9, 0
    %p50 = por %p48, %p49
    %p51 = scmp.ne.s32.totalorder %s43, %s45
    %p52 = scmp.eq.s32.totalorder %s14, 1
    %p53 = por %p51, %p52
    %p54 = scmp.ne.s32.totalorder %s45, %s46
    %p55 = scmp.eq.s32.totalorder %s14, 0
    %p56 = por %p54, %p55
    %p57 = scmp.ne.s32.totalorder %s45, %s46
    %p58 = scmp.eq.s32.totalorder %s15, 1
    %p59 = por %p57, %p58
    %p61 = scmp.ne.s32.totalorder %s46, %s60
    %p62 = scmp.eq.s32.totalorder %s15, 0
    %p63 = por %p61, %p62
    %s65 = sadd.s32 %s64, 1
    %p68 = scmp.eq.s32.totalorder %s9, 1
    %p69 = scmp.ne.s32.totalorder %s64, %s66
    %p70 = scmp.eq.s32.totalorder %s9, 0
    %p71 = por %p69, %p70
    %p72 = scmp.ne.s32.totalorder %s64, %s66
    %p73 = scmp.eq.s32.totalorder %s14, 1
    %p74 = por %p72, %p73
    %p75 = scmp.ne.s32.totalorder %s66, %s67
    %p76 = scmp.eq.s32.totalorder %s14, 0
    %p77 = por %p75, %p76
    %p78 = scmp.ne.s32.totalorder %s66, %s67
    %p79 = scmp.eq.s32.totalorder %s15, 1
    %p80 = por %p78, %p79
    %p82 = scmp.ne.s32.totalorder %s67, %s81
    %p83 = scmp.eq.s32.totalorder %s15, 0
    %p84 = por %p82, %p83
    %s85 = ssub.s32 %s9, %s16
    %p86 = scmp.eq.s32.totalorder %s85, 0
    %s88 = sadd.s32 %s87, 1
    %s89 = scalar_select %p86, %s87, %s88
    %p92 = pneg %p86
    %p93 = scmp.eq.s32.totalorder %s9, 1
    %p94 = por %p92, %p93
    %p95 = scmp.ne.s32.totalorder %s87, %s90
    %p96 = scmp.eq.s32.totalorder %s9, 0
    %p97 = por %p95, %p96
    %p98 = scmp.ne.s32.totalorder %s87, %s90
    %p99 = scmp.eq.s32.totalorder %s14, 1
    %p100 = por %p98, %p99
    %p101 = scmp.ne.s32.totalorder %s90, %s91
    %p102 = scmp.eq.s32.totalorder %s14, 0
    %p103 = por %p101, %p102
    %p104 = scmp.ne.s32.totalorder %s90, %s91
    %p105 = scmp.eq.s32.totalorder %s15, 1
    %p106 = por %p104, %p105
    %p108 = scmp.ne.s32.totalorder %s91, %s107
    %p109 = scmp.eq.s32.totalorder %s15, 0
    %p110 = por %p108, %p109
    %p111 = scmp.le.s32.totalorder 1, %s9
    %p112 = scmp.lt.s32.totalorder %s9, 3
    %p113 = pnand %p111, %p112
    %p114 = pneg %p113
    // Predicated region
    $region9: #{conv2d_5x5_forward.1} parent=5 // pred_check
      _
    $region10: #{conv2d_5x5_forward.1} parent=5 // pred_check_branch
      %116 = sbr.rel (%p113) target = $region12
    $region11: #{conv2d_5x5_forward.1} parent=5 // pred_region
      %s117 = ssub.s32 %s9, 1
      // Predicated region
      $region13: #{conv2d_5x5_forward.1} parent=11 // pred_check
        %p118 = pneg %p56
      $region14: #{conv2d_5x5_forward.1} parent=11 // pred_check_branch
        %120 = sbr.rel (%p118) target = $region16
      $region15: #{conv2d_5x5_forward.1} parent=11 // pred_region
        _
      $region16: #{conv2d_5x5_forward.1} parent=11 // pred_fallthru
        _
      // Predicated region
      $region17: #{conv2d_5x5_forward.1} parent=11 // pred_check
        %p121 = pneg %p77
      $region18: #{conv2d_5x5_forward.1} parent=11 // pred_check_branch
        %123 = sbr.rel (%p121) target = $region20
      $region19: #{conv2d_5x5_forward.1} parent=11 // pred_region
        _
      $region20: #{conv2d_5x5_forward.1} parent=11 // pred_fallthru
        _
    $region12: #{conv2d_5x5_forward.1} parent=5 // pred_fallthru
      _
    %p124 = scmp.lt.s32.totalorder %s9, 2
    // Predicated region
    $region21: #{conv2d_5x5_forward.1} parent=5 // pred_check
      %p125 = pneg %p124
    $region22: #{conv2d_5x5_forward.1} parent=5 // pred_check_branch
      %127 = sbr.rel (%p125) target = $region24
    $region23: #{conv2d_5x5_forward.1} parent=5 // pred_region
      // Predicated region
      $region25: #{conv2d_5x5_forward.1} parent=23 // pred_check
        %p128 = pneg %p29
      $region26: #{conv2d_5x5_forward.1} parent=23 // pred_check_branch
        %130 = sbr.rel (%p128) target = $region28
      $region27: #{conv2d_5x5_forward.1} parent=23 // pred_region
        %p131 = scmp.lt.s32.totalorder %s9, 1
        %s132 = scalar_select %p131, %s9, 1
        %s133 = smul.addr %s132, 2
        %s134 = smul.addr %s133, 4
        %s135 = scalar_lea.vmem %s0, %s134
      $region28: #{conv2d_5x5_forward.1} parent=23 // pred_fallthru
        _
    $region24: #{conv2d_5x5_forward.1} parent=5 // pred_fallthru
      _
    %p136 = scmp.le.s32.totalorder 1, %s9
    %p137 = scmp.lt.s32.totalorder %s9, 3
    %p138 = pnand %p136, %p137
    %p139 = pneg %p138
    // Predicated region
    $region29: #{conv2d_5x5_forward.1} parent=5 // pred_check
      _
    $region30: #{conv2d_5x5_forward.1} parent=5 // pred_check_branch
      %141 = sbr.rel (%p138) target = $region32
    $region31: #{conv2d_5x5_forward.1} parent=5 // pred_region
      %s142 = ssub.s32 %s9, 1
      %p143 = scmp.lt.s32.totalorder %s14, 1
      %s144 = scalar_select %p143, %s14, 1
      %s145 = smul.addr %s144, 2
      %s146 = smul.addr %s145, 4
      %s147 = scalar_lea.vmem %s0, %s146
      %p148 = pneg %p35
      %p149 = pneg %p32
      %p150 = pneg %p56
      %p151 = pneg %p53
      %p152 = pneg %p77
      %p153 = pneg %p74
      %p154 = pneg %p103
      %p155 = pneg %p100
      %p156 = scmp.lt.s32.totalorder %s14, 1
      %s157 = scalar_select %p156, %s14, 1
      %s158 = smul.addr %s157, 2
      %s159 = smul.addr %s158, 8
      %s160 = scalar_lea.vmem %s3, %s159
      %p161 = scmp.lt.s32.totalorder %s14, 1
      %s162 = scalar_select %p161, %s14, 1
      %s163 = smul.addr %s162, 2
      %s164 = smul.addr %s163, 4
      %s165 = scalar_lea.vmem %s0, %s164
      %p166 = scmp.lt.s32.totalorder %s14, 1
      %s167 = scalar_select %p166, %s14, 1
      %s168 = smul.addr %s167, 2
      %s169 = smul.addr %s168, 8
      %s170 = scalar_lea.vmem %s3, %s169
      %v171 = vld [vmem:[%s165] sm:$0xff]
      %v173 = vcombine.high %v171, %v171
      %174 = vrot.lane.b32.xlu0 %v171, 34
      %v175 = vpop.permute.xlu0 %174
      %176 = vrot.lane.b32.xlu0 %v173, 34
      %v177 = vpop.permute.xlu0 %176
      %vm178 = vcmask 277504
      %v179 = vsel %vm178, %v175, %v177
      %v183 = vsel %vm178, 0.0, %v175
      %v184 = vsel %vm178, %v177, 0.0
      %v185 = vld [vmem:[%s2] ss:$8 sm:$0x3]
      %v187 = vlaneseq
      %v188 = vshrl.u32 %v187, 7
      %v189 = vsub.s32 0, %v188
      %v190 = vrot.slane %v185, %v189
      %v191 = vlaneseq
      %v192 = vshrl.u32 %v191, 7
      %v193 = vsub.s32 1, %v192
      %v194 = vrot.slane %v185, %v193
      %v197 = vmul.f32 %v183, %v190
      %v198 = vmul.f32 %v179, %v194
      %s199 = scalar_lea.vmem %s2, 1
      %v200 = vld [vmem:[%s199] ss:$8 sm:$0x3]
      %v202 = vlaneseq
      %v203 = vshrl.u32 %v202, 7
      %v204 = vsub.s32 0, %v203
      %v205 = vrot.slane %v200, %v204
      %v206 = vlaneseq
      %v207 = vshrl.u32 %v206, 7
      %v208 = vsub.s32 1, %v207
      %v209 = vrot.slane %v200, %v208
      %210 = vrot.lane.b32.xlu0 %v205, 1
      %v211 = vpop.permute.xlu0 %210
      %212 = vrot.lane.b32.xlu0 %v209, 1
      %v213 = vpop.permute.xlu0 %212
      %vm214 = vcmask 7168
      %v215 = vsel %vm214, %v211, %v213
      %v219 = vmul.f32 %v183, %v211
      %v220 = vmul.f32 %v179, %v215
      %v221 = vmul.f32 %v184, %v213
      %s222 = scalar_lea.vmem %s2, 2
      %v223 = vld [vmem:[%s222] ss:$8 sm:$0x3]
      %v225 = vlaneseq
      %v226 = vshrl.u32 %v225, 7
      %v227 = vsub.s32 0, %v226
      %v228 = vrot.slane %v223, %v227
      %v229 = vlaneseq
      %v230 = vshrl.u32 %v229, 7
      %v231 = vsub.s32 1, %v230
      %v232 = vrot.slane %v223, %v231
      %233 = vrot.lane.b32.xlu0 %v228, 2
      %v234 = vpop.permute.xlu0 %233
      %235 = vrot.lane.b32.xlu0 %v232, 2
      %v236 = vpop.permute.xlu0 %235
      %vm237 = vcmask 15360
      %v238 = vsel %vm237, %v234, %v236
      %v242 = vmul.f32 %v183, %v234
      %v243 = vmul.f32 %v179, %v238
      %v244 = vmul.f32 %v184, %v236
      %s245 = scalar_lea.vmem %s2, 3
      %v246 = vld [vmem:[%s245] ss:$8 sm:$0x3]
      %v248 = vlaneseq
      %v249 = vshrl.u32 %v248, 7
      %v250 = vsub.s32 0, %v249
      %v251 = vrot.slane %v246, %v250
      %v252 = vlaneseq
      %v253 = vshrl.u32 %v252, 7
      %v254 = vsub.s32 1, %v253
      %v255 = vrot.slane %v246, %v254
      %256 = vrot.lane.b32.xlu0 %v251, 3
      %v257 = vpop.permute.xlu0 %256
      %258 = vrot.lane.b32.xlu0 %v255, 3
      %v259 = vpop.permute.xlu0 %258
      %vm260 = vcmask 23552
      %v261 = vsel %vm260, %v257, %v259
      %v265 = vmul.f32 %v183, %v257
      %v266 = vmul.f32 %v179, %v261
      %v267 = vmul.f32 %v184, %v259
      %s268 = scalar_lea.vmem %s2, 4
      %v269 = vld [vmem:[%s268] ss:$8 sm:$0x3]
      %v271 = vlaneseq
      %v272 = vshrl.u32 %v271, 7
      %v273 = vsub.s32 0, %v272
      %v274 = vrot.slane %v269, %v273
      %v275 = vlaneseq
      %v276 = vshrl.u32 %v275, 7
      %v277 = vsub.s32 1, %v276
      %v278 = vrot.slane %v269, %v277
      %279 = vrot.lane.b32.xlu0 %v274, 4
      %v280 = vpop.permute.xlu0 %279
      %281 = vrot.lane.b32.xlu0 %v278, 4
      %v282 = vpop.permute.xlu0 %281
      %vm283 = vcmask 31744
      %v284 = vsel %vm283, %v280, %v282
      %v288 = vmul.f32 %v183, %v280
      %v289 = vmul.f32 %v179, %v284
      %v290 = vmul.f32 %v184, %v282
      %s291 = scalar_lea.vmem %s2, 5
      %v292 = vld [vmem:[%s291] ss:$8 sm:$0x3]
      %v294 = vlaneseq
      %v295 = vshrl.u32 %v294, 7
      %v296 = vsub.s32 0, %v295
      %v297 = vrot.slane %v292, %v296
      %v298 = vlaneseq
      %v299 = vshrl.u32 %v298, 7
      %v300 = vsub.s32 1, %v299
      %v301 = vrot.slane %v292, %v300
      %302 = vrot.lane.b32.xlu0 %v297, 16
      %v303 = vpop.permute.xlu0 %302
      %304 = vrot.lane.b32.xlu0 %v301, 16
      %v305 = vpop.permute.xlu0 %304
      %vm306 = vcmask 130048
      %v307 = vsel %vm306, %v303, %v305
      %v311 = vmul.f32 %v183, %v303
      %v312 = vmul.f32 %v179, %v307
      %v313 = vmul.f32 %v184, %v305
      %s314 = scalar_lea.vmem %s2, 6
      %v315 = vld [vmem:[%s314] ss:$8 sm:$0x3]
      %v317 = vlaneseq
      %v318 = vshrl.u32 %v317, 7
      %v319 = vsub.s32 0, %v318
      %v320 = vrot.slane %v315, %v319
      %v321 = vlaneseq
      %v322 = vshrl.u32 %v321, 7
      %v323 = vsub.s32 1, %v322
      %v324 = vrot.slane %v315, %v323
      %325 = vrot.lane.b32.xlu0 %v320, 17
      %v326 = vpop.permute.xlu0 %325
      %327 = vrot.lane.b32.xlu0 %v324, 17
      %v328 = vpop.permute.xlu0 %327
      %vm329 = vcmask 138240
      %v330 = vsel %vm329, %v326, %v328
      %v334 = vmul.f32 %v183, %v326
      %v335 = vmul.f32 %v179, %v330
      %v336 = vmul.f32 %v184, %v328
      %s337 = scalar_lea.vmem %s2, 7
      %v338 = vld [vmem:[%s337] ss:$8 sm:$0x3]
      %v340 = vlaneseq
      %v341 = vshrl.u32 %v340, 7
      %v342 = vsub.s32 0, %v341
      %v343 = vrot.slane %v338, %v342
      %v344 = vlaneseq
      %v345 = vshrl.u32 %v344, 7
      %v346 = vsub.s32 1, %v345
      %v347 = vrot.slane %v338, %v346
      %348 = vrot.lane.b32.xlu0 %v343, 18
      %v349 = vpop.permute.xlu0 %348
      %350 = vrot.lane.b32.xlu0 %v347, 18
      %v351 = vpop.permute.xlu0 %350
      %vm352 = vcmask 146432
      %v353 = vsel %vm352, %v349, %v351
      %v357 = vmul.f32 %v183, %v349
      %v358 = vmul.f32 %v179, %v353
      %v359 = vmul.f32 %v184, %v351
      %s360 = scalar_lea.vmem %s2, 16
      %v361 = vld [vmem:[%s360] ss:$8 sm:$0x3]
      %v363 = vlaneseq
      %v364 = vshrl.u32 %v363, 7
      %v365 = vsub.s32 0, %v364
      %v366 = vrot.slane %v361, %v365
      %v367 = vlaneseq
      %v368 = vshrl.u32 %v367, 7
      %v369 = vsub.s32 1, %v368
      %v370 = vrot.slane %v361, %v369
      %371 = vrot.lane.b32.xlu0 %v366, 19
      %v372 = vpop.permute.xlu0 %371
      %373 = vrot.lane.b32.xlu0 %v370, 19
      %v374 = vpop.permute.xlu0 %373
      %vm375 = vcmask 154624
      %v376 = vsel %vm375, %v372, %v374
      %v380 = vmul.f32 %v183, %v372
      %v381 = vmul.f32 %v179, %v376
      %v382 = vmul.f32 %v184, %v374
      %s383 = scalar_lea.vmem %s2, 17
      %v384 = vld [vmem:[%s383] ss:$8 sm:$0x3]
      %v386 = vlaneseq
      %v387 = vshrl.u32 %v386, 7
      %v388 = vsub.s32 0, %v387
      %v389 = vrot.slane %v384, %v388
      %v390 = vlaneseq
      %v391 = vshrl.u32 %v390, 7
      %v392 = vsub.s32 1, %v391
      %v393 = vrot.slane %v384, %v392
      %394 = vrot.lane.b32.xlu0 %v389, 20
      %v395 = vpop.permute.xlu0 %394
      %396 = vrot.lane.b32.xlu0 %v393, 20
      %v397 = vpop.permute.xlu0 %396
      %vm398 = vcmask 162816
      %v399 = vsel %vm398, %v395, %v397
      %v403 = vmul.f32 %v183, %v395
      %v404 = vmul.f32 %v179, %v399
      %v405 = vmul.f32 %v184, %v397
      %s406 = scalar_lea.vmem %s2, 18
      %v407 = vld [vmem:[%s406] ss:$8 sm:$0x3]
      %v409 = vlaneseq
      %v410 = vshrl.u32 %v409, 7
      %v411 = vsub.s32 0, %v410
      %v412 = vrot.slane %v407, %v411
      %v413 = vlaneseq
      %v414 = vshrl.u32 %v413, 7
      %v415 = vsub.s32 1, %v414
      %v416 = vrot.slane %v407, %v415
      %417 = vrot.lane.b32.xlu0 %v412, 32
      %v418 = vpop.permute.xlu0 %417
      %419 = vrot.lane.b32.xlu0 %v416, 32
      %v420 = vpop.permute.xlu0 %419
      %vm421 = vcmask 261120
      %v422 = vsel %vm421, %v418, %v420
      %v426 = vmul.f32 %v183, %v418
      %v427 = vmul.f32 %v179, %v422
      %v428 = vmul.f32 %v184, %v420
      %s429 = scalar_lea.vmem %s2, 19
      %v430 = vld [vmem:[%s429] ss:$8 sm:$0x3]
      %v432 = vlaneseq
      %v433 = vshrl.u32 %v432, 7
      %v434 = vsub.s32 0, %v433
      %v435 = vrot.slane %v430, %v434
      %v436 = vlaneseq
      %v437 = vshrl.u32 %v436, 7
      %v438 = vsub.s32 1, %v437
      %v439 = vrot.slane %v430, %v438
      %440 = vrot.lane.b32.xlu0 %v435, 33
      %v441 = vpop.permute.xlu0 %440
      %442 = vrot.lane.b32.xlu0 %v439, 33
      %v443 = vpop.permute.xlu0 %442
      %vm444 = vcmask 269312
      %v445 = vsel %vm444, %v441, %v443
      %v449 = vmul.f32 %v183, %v441
      %v450 = vmul.f32 %v179, %v445
      %v451 = vmul.f32 %v184, %v443
      %s452 = scalar_lea.vmem %s2, 20
      %v453 = vld [vmem:[%s452] ss:$8 sm:$0x3]
      %v455 = vlaneseq
      %v456 = vshrl.u32 %v455, 7
      %v457 = vsub.s32 0, %v456
      %v458 = vrot.slane %v453, %v457
      %v459 = vlaneseq
      %v460 = vshrl.u32 %v459, 7
      %v461 = vsub.s32 1, %v460
      %v462 = vrot.slane %v453, %v461
      %463 = vrot.lane.b32.xlu0 %v458, 34
      %v464 = vpop.permute.xlu0 %463
      %465 = vrot.lane.b32.xlu0 %v462, 34
      %v466 = vpop.permute.xlu0 %465
      %v467 = vsel %vm178, %v464, %v466
      %v471 = vmul.f32 %v183, %v464
      %v472 = vmul.f32 %v179, %v467
      %v473 = vmul.f32 %v184, %v466
      %s474 = scalar_lea.vmem %s2, 21
      %v475 = vld [vmem:[%s474] ss:$8 sm:$0x3]
      %v477 = vlaneseq
      %v478 = vshrl.u32 %v477, 7
      %v479 = vsub.s32 0, %v478
      %v480 = vrot.slane %v475, %v479
      %v481 = vlaneseq
      %v482 = vshrl.u32 %v481, 7
      %v483 = vsub.s32 1, %v482
      %v484 = vrot.slane %v475, %v483
      %485 = vrot.lane.b32.xlu0 %v480, 35
      %v486 = vpop.permute.xlu0 %485
      %487 = vrot.lane.b32.xlu0 %v484, 35
      %v488 = vpop.permute.xlu0 %487
      %vm489 = vcmask 285696
      %v490 = vsel %vm489, %v486, %v488
      %v494 = vmul.f32 %v183, %v486
      %v495 = vmul.f32 %v179, %v490
      %v496 = vmul.f32 %v184, %v488
      %s497 = scalar_lea.vmem %s2, 22
      %v498 = vld [vmem:[%s497] ss:$8 sm:$0x3]
      %v500 = vlaneseq
      %v501 = vshrl.u32 %v500, 7
      %v502 = vsub.s32 0, %v501
      %v503 = vrot.slane %v498, %v502
      %v504 = vlaneseq
      %v505 = vshrl.u32 %v504, 7
      %v506 = vsub.s32 1, %v505
      %v507 = vrot.slane %v498, %v506
      %508 = vrot.lane.b32.xlu0 %v503, 36
      %v509 = vpop.permute.xlu0 %508
      %510 = vrot.lane.b32.xlu0 %v507, 36
      %v511 = vpop.permute.xlu0 %510
      %vm512 = vcmask 293888
      %v513 = vsel %vm512, %v509, %v511
      %v517 = vmul.f32 %v183, %v509
      %v518 = vmul.f32 %v179, %v513
      %v519 = vmul.f32 %v184, %v511
      %s520 = scalar_lea.vmem %s2, 23
      %v521 = vld [vmem:[%s520] ss:$8 sm:$0x3]
      %v523 = vlaneseq
      %v524 = vshrl.u32 %v523, 7
      %v525 = vsub.s32 0, %v524
      %v526 = vrot.slane %v521, %v525
      %v527 = vlaneseq
      %v528 = vshrl.u32 %v527, 7
      %v529 = vsub.s32 1, %v528
      %v530 = vrot.slane %v521, %v529
      %531 = vrot.lane.b32.xlu0 %v526, 48
      %v532 = vpop.permute.xlu0 %531
      %533 = vrot.lane.b32.xlu0 %v530, 48
      %v534 = vpop.permute.xlu0 %533
      %vm535 = vcmask 392192
      %v536 = vsel %vm535, %v532, %v534
      %v540 = vmul.f32 %v183, %v532
      %v541 = vmul.f32 %v179, %v536
      %v542 = vmul.f32 %v184, %v534
      %s543 = scalar_lea.vmem %s2, 32
      %v544 = vld [vmem:[%s543] ss:$8 sm:$0x3]
      %v546 = vlaneseq
      %v547 = vshrl.u32 %v546, 7
      %v548 = vsub.s32 0, %v547
      %v549 = vrot.slane %v544, %v548
      %v550 = vlaneseq
      %v551 = vshrl.u32 %v550, 7
      %v552 = vsub.s32 1, %v551
      %v553 = vrot.slane %v544, %v552
      %554 = vrot.lane.b32.xlu0 %v549, 49
      %v555 = vpop.permute.xlu0 %554
      %556 = vrot.lane.b32.xlu0 %v553, 49
      %v557 = vpop.permute.xlu0 %556
      %vm558 = vcmask 400384
      %v559 = vsel %vm558, %v555, %v557
      %v563 = vmul.f32 %v183, %v555
      %v564 = vmul.f32 %v179, %v559
      %v565 = vmul.f32 %v184, %v557
      %s566 = scalar_lea.vmem %s2, 33
      %v567 = vld [vmem:[%s566] ss:$8 sm:$0x3]
      %v569 = vlaneseq
      %v570 = vshrl.u32 %v569, 7
      %v571 = vsub.s32 0, %v570
      %v572 = vrot.slane %v567, %v571
      %v573 = vlaneseq
      %v574 = vshrl.u32 %v573, 7
      %v575 = vsub.s32 1, %v574
      %v576 = vrot.slane %v567, %v575
      %577 = vrot.lane.b32.xlu0 %v572, 50
      %v578 = vpop.permute.xlu0 %577
      %579 = vrot.lane.b32.xlu0 %v576, 50
      %v580 = vpop.permute.xlu0 %579
      %vm581 = vcmask 408576
      %v582 = vsel %vm581, %v578, %v580
      %v586 = vmul.f32 %v183, %v578
      %v587 = vmul.f32 %v179, %v582
      %v588 = vmul.f32 %v184, %v580
      %s589 = scalar_lea.vmem %s2, 34
      %v590 = vld [vmem:[%s589] ss:$8 sm:$0x3]
      %v592 = vlaneseq
      %v593 = vshrl.u32 %v592, 7
      %v594 = vsub.s32 0, %v593
      %v595 = vrot.slane %v590, %v594
      %v596 = vlaneseq
      %v597 = vshrl.u32 %v596, 7
      %v598 = vsub.s32 1, %v597
      %v599 = vrot.slane %v590, %v598
      %600 = vrot.lane.b32.xlu0 %v595, 51
      %v601 = vpop.permute.xlu0 %600
      %602 = vrot.lane.b32.xlu0 %v599, 51
      %v603 = vpop.permute.xlu0 %602
      %vm604 = vcmask 416768
      %v605 = vsel %vm604, %v601, %v603
      %v609 = vmul.f32 %v183, %v601
      %v610 = vmul.f32 %v179, %v605
      %v611 = vmul.f32 %v184, %v603
      %s612 = scalar_lea.vmem %s2, 35
      %v613 = vld [vmem:[%s612] ss:$8 sm:$0x3]
      %v615 = vlaneseq
      %v616 = vshrl.u32 %v615, 7
      %v617 = vsub.s32 0, %v616
      %v618 = vrot.slane %v613, %v617
      %v619 = vlaneseq
      %v620 = vshrl.u32 %v619, 7
      %v621 = vsub.s32 1, %v620
      %v622 = vrot.slane %v613, %v621
      %623 = vrot.lane.b32.xlu0 %v618, 52
      %v624 = vpop.permute.xlu0 %623
      %625 = vrot.lane.b32.xlu0 %v622, 52
      %v626 = vpop.permute.xlu0 %625
      %vm627 = vcmask 424960
      %v628 = vsel %vm627, %v624, %v626
      %v632 = vmul.f32 %v183, %v624
      %v633 = vmul.f32 %v179, %v628
      %v634 = vmul.f32 %v184, %v626
      %s635 = scalar_lea.vmem %s2, 36
      %v636 = vld [vmem:[%s635] ss:$8 sm:$0x3]
      %v638 = vlaneseq
      %v639 = vshrl.u32 %v638, 7
      %v640 = vsub.s32 0, %v639
      %v641 = vrot.slane %v636, %v640
      %v642 = vlaneseq
      %v643 = vshrl.u32 %v642, 7
      %v644 = vsub.s32 1, %v643
      %v645 = vrot.slane %v636, %v644
      %646 = vrot.lane.b32.xlu0 %v641, 64
      %v647 = vpop.permute.xlu0 %646
      %648 = vrot.lane.b32.xlu0 %v645, 64
      %v649 = vpop.permute.xlu0 %648
      %vm650 = vcmask 523264
      %v651 = vsel %vm650, %v647, %v649
      %v655 = vmul.f32 %v183, %v647
      %v656 = vmul.f32 %v179, %v651
      %v657 = vmul.f32 %v184, %v649
      %s658 = scalar_lea.vmem %s2, 37
      %v659 = vld [vmem:[%s658] ss:$8 sm:$0x3]
      %v661 = vlaneseq
      %v662 = vshrl.u32 %v661, 7
      %v663 = vsub.s32 0, %v662
      %v664 = vrot.slane %v659, %v663
      %v665 = vlaneseq
      %v666 = vshrl.u32 %v665, 7
      %v667 = vsub.s32 1, %v666
      %v668 = vrot.slane %v659, %v667
      %669 = vrot.lane.b32.xlu0 %v664, 65
      %v670 = vpop.permute.xlu0 %669
      %671 = vrot.lane.b32.xlu0 %v668, 65
      %v672 = vpop.permute.xlu0 %671
      %vm673 = vcmask 531456
      %v674 = vsel %vm673, %v670, %v672
      %v678 = vmul.f32 %v183, %v670
      %v679 = vmul.f32 %v179, %v674
      %v680 = vmul.f32 %v184, %v672
      %s681 = scalar_lea.vmem %s2, 38
      %v682 = vld [vmem:[%s681] ss:$8 sm:$0x3]
      %v684 = vlaneseq
      %v685 = vshrl.u32 %v684, 7
      %v686 = vsub.s32 0, %v685
      %v687 = vrot.slane %v682, %v686
      %v688 = vlaneseq
      %v689 = vshrl.u32 %v688, 7
      %v690 = vsub.s32 1, %v689
      %v691 = vrot.slane %v682, %v690
      %692 = vrot.lane.b32.xlu0 %v687, 66
      %v693 = vpop.permute.xlu0 %692
      %694 = vrot.lane.b32.xlu0 %v691, 66
      %v695 = vpop.permute.xlu0 %694
      %vm696 = vcmask 539648
      %v697 = vsel %vm696, %v693, %v695
      %v701 = vmul.f32 %v183, %v693
      %v702 = vmul.f32 %v179, %v697
      %v703 = vmul.f32 %v184, %v695
      %s704 = scalar_lea.vmem %s2, 39
      %v705 = vld [vmem:[%s704] ss:$8 sm:$0x3]
      %v707 = vlaneseq
      %v708 = vshrl.u32 %v707, 7
      %v709 = vsub.s32 0, %v708
      %v710 = vrot.slane %v705, %v709
      %v711 = vlaneseq
      %v712 = vshrl.u32 %v711, 7
      %v713 = vsub.s32 1, %v712
      %v714 = vrot.slane %v705, %v713
      %715 = vrot.lane.b32.xlu0 %v710, 67
      %v716 = vpop.permute.xlu0 %715
      %717 = vrot.lane.b32.xlu0 %v714, 67
      %v718 = vpop.permute.xlu0 %717
      %vm719 = vcmask 547840
      %v720 = vsel %vm719, %v716, %v718
      %v724 = vmul.f32 %v183, %v716
      %v725 = vmul.f32 %v179, %v720
      %v726 = vmul.f32 %v184, %v718
      %s727 = scalar_lea.vmem %s2, 48
      %v728 = vld [vmem:[%s727] ss:$8 sm:$0x3]
      %v730 = vlaneseq
      %v731 = vshrl.u32 %v730, 7
      %v732 = vsub.s32 0, %v731
      %v733 = vrot.slane %v728, %v732
      %v734 = vlaneseq
      %v735 = vshrl.u32 %v734, 7
      %v736 = vsub.s32 1, %v735
      %v737 = vrot.slane %v728, %v736
      %738 = vrot.lane.b32.xlu0 %v733, 68
      %v739 = vpop.permute.xlu0 %738
      %740 = vrot.lane.b32.xlu0 %v737, 68
      %v741 = vpop.permute.xlu0 %740
      %vm742 = vcmask 556032
      %v743 = vsel %vm742, %v739, %v741
      %v747 = vmul.f32 %v183, %v739
      %v748 = vmul.f32 %v179, %v743
      %v749 = vmul.f32 %v184, %v741
      %v753 = vrot.slane %v219, 4
      %v754 = vrot.slane %v220, 4
      %v755 = vrot.slane %v221, 4
      %756 = vrot.lane.b32.xlu0 %v753, 127
      %v757 = vpop.permute.xlu0 %756
      %758 = vrot.lane.b32.xlu0 %v754, 127
      %v759 = vpop.permute.xlu0 %758
      %760 = vrot.lane.b32.xlu0 %v755, 127
      %v761 = vpop.permute.xlu0 %760
      %vm762 = vcmask 1039360
      %v763 = vsel %vm762, %v757, %v759
      %v764 = vsel %vm762, %v759, %v761
      %770 = vrot.lane.b32.xlu0 %v242, 126
      %v771 = vpop.permute.xlu0 %770
      %772 = vrot.lane.b32.xlu0 %v243, 126
      %v773 = vpop.permute.xlu0 %772
      %774 = vrot.lane.b32.xlu0 %v244, 126
      %v775 = vpop.permute.xlu0 %774
      %vm776 = vcmask 1031168
      %v777 = vsel %vm776, %v771, %v773
      %v778 = vsel %vm776, %v773, %v775
      %v784 = vrot.slane %v265, 4
      %v785 = vrot.slane %v266, 4
      %v786 = vrot.slane %v267, 4
      %787 = vrot.lane.b32.xlu0 %v784, 125
      %v788 = vpop.permute.xlu0 %787
      %789 = vrot.lane.b32.xlu0 %v785, 125
      %v790 = vpop.permute.xlu0 %789
      %791 = vrot.lane.b32.xlu0 %v786, 125
      %v792 = vpop.permute.xlu0 %791
      %vm793 = vcmask 1022976
      %v794 = vsel %vm793, %v788, %v790
      %v795 = vsel %vm793, %v790, %v792
      %801 = vrot.lane.b32.xlu0 %v288, 124
      %v802 = vpop.permute.xlu0 %801
      %803 = vrot.lane.b32.xlu0 %v289, 124
      %v804 = vpop.permute.xlu0 %803
      %805 = vrot.lane.b32.xlu0 %v290, 124
      %v806 = vpop.permute.xlu0 %805
      %vm807 = vcmask 1014784
      %v808 = vsel %vm807, %v802, %v804
      %v809 = vsel %vm807, %v804, %v806
      %v815 = vrot.slane %v311, 4
      %v816 = vrot.slane %v312, 4
      %v817 = vrot.slane %v313, 4
      %818 = vrot.lane.b32.xlu0 %v815, 112
      %v819 = vpop.permute.xlu0 %818
      %820 = vrot.lane.b32.xlu0 %v816, 112
      %v821 = vpop.permute.xlu0 %820
      %822 = vrot.lane.b32.xlu0 %v817, 112
      %v823 = vpop.permute.xlu0 %822
      %vm824 = vcmask 916480
      %v825 = vsel %vm824, %v819, %v821
      %v826 = vsel %vm824, %v821, %v823
      %832 = vrot.lane.b32.xlu0 %v334, 111
      %v833 = vpop.permute.xlu0 %832
      %834 = vrot.lane.b32.xlu0 %v335, 111
      %v835 = vpop.permute.xlu0 %834
      %836 = vrot.lane.b32.xlu0 %v336, 111
      %v837 = vpop.permute.xlu0 %836
      %vm838 = vcmask 908288
      %v839 = vsel %vm838, %v833, %v835
      %v840 = vsel %vm838, %v835, %v837
      %v846 = vrot.slane %v357, 4
      %v847 = vrot.slane %v358, 4
      %v848 = vrot.slane %v359, 4
      %849 = vrot.lane.b32.xlu0 %v846, 110
      %v850 = vpop.permute.xlu0 %849
      %851 = vrot.lane.b32.xlu0 %v847, 110
      %v852 = vpop.permute.xlu0 %851
      %853 = vrot.lane.b32.xlu0 %v848, 110
      %v854 = vpop.permute.xlu0 %853
      %vm855 = vcmask 900096
      %v856 = vsel %vm855, %v850, %v852
      %v857 = vsel %vm855, %v852, %v854
      %863 = vrot.lane.b32.xlu0 %v380, 109
      %v864 = vpop.permute.xlu0 %863
      %865 = vrot.lane.b32.xlu0 %v381, 109
      %v866 = vpop.permute.xlu0 %865
      %867 = vrot.lane.b32.xlu0 %v382, 109
      %v868 = vpop.permute.xlu0 %867
      %vm869 = vcmask 891904
      %v870 = vsel %vm869, %v864, %v866
      %v871 = vsel %vm869, %v866, %v868
      %v877 = vrot.slane %v403, 4
      %v878 = vrot.slane %v404, 4
      %v879 = vrot.slane %v405, 4
      %880 = vrot.lane.b32.xlu0 %v877, 108
      %v881 = vpop.permute.xlu0 %880
      %882 = vrot.lane.b32.xlu0 %v878, 108
      %v883 = vpop.permute.xlu0 %882
      %884 = vrot.lane.b32.xlu0 %v879, 108
      %v885 = vpop.permute.xlu0 %884
      %vm886 = vcmask 883712
      %v887 = vsel %vm886, %v881, %v883
      %v888 = vsel %vm886, %v883, %v885
      %894 = vrot.lane.b32.xlu0 %v426, 96
      %v895 = vpop.permute.xlu0 %894
      %896 = vrot.lane.b32.xlu0 %v427, 96
      %v897 = vpop.permute.xlu0 %896
      %898 = vrot.lane.b32.xlu0 %v428, 96
      %v899 = vpop.permute.xlu0 %898
      %vm900 = vcmask 785408
      %v901 = vsel %vm900, %v895, %v897
      %v902 = vsel %vm900, %v897, %v899
      %v908 = vrot.slane %v449, 4
      %v909 = vrot.slane %v450, 4
      %v910 = vrot.slane %v451, 4
      %911 = vrot.lane.b32.xlu0 %v908, 95
      %v912 = vpop.permute.xlu0 %911
      %913 = vrot.lane.b32.xlu0 %v909, 95
      %v914 = vpop.permute.xlu0 %913
      %915 = vrot.lane.b32.xlu0 %v910, 95
      %v916 = vpop.permute.xlu0 %915
      %vm917 = vcmask 777216
      %v918 = vsel %vm917, %v912, %v914
      %v919 = vsel %vm917, %v914, %v916
      %925 = vrot.lane.b32.xlu0 %v471, 94
      %v926 = vpop.permute.xlu0 %925
      %927 = vrot.lane.b32.xlu0 %v472, 94
      %v928 = vpop.permute.xlu0 %927
      %929 = vrot.lane.b32.xlu0 %v473, 94
      %v930 = vpop.permute.xlu0 %929
      %vm931 = vcmask 769024
      %v932 = vsel %vm931, %v926, %v928
      %v933 = vsel %vm931, %v928, %v930
      %v939 = vrot.slane %v494, 4
      %v940 = vrot.slane %v495, 4
      %v941 = vrot.slane %v496, 4
      %942 = vrot.lane.b32.xlu0 %v939, 93
      %v943 = vpop.permute.xlu0 %942
      %944 = vrot.lane.b32.xlu0 %v940, 93
      %v945 = vpop.permute.xlu0 %944
      %946 = vrot.lane.b32.xlu0 %v941, 93
      %v947 = vpop.permute.xlu0 %946
      %vm948 = vcmask 760832
      %v949 = vsel %vm948, %v943, %v945
      %v950 = vsel %vm948, %v945, %v947
      %956 = vrot.lane.b32.xlu0 %v517, 92
      %v957 = vpop.permute.xlu0 %956
      %958 = vrot.lane.b32.xlu0 %v518, 92
      %v959 = vpop.permute.xlu0 %958
      %960 = vrot.lane.b32.xlu0 %v519, 92
      %v961 = vpop.permute.xlu0 %960
      %vm962 = vcmask 752640
      %v963 = vsel %vm962, %v957, %v959
      %v964 = vsel %vm962, %v959, %v961
      %v970 = vrot.slane %v540, 4
      %v971 = vrot.slane %v541, 4
      %v972 = vrot.slane %v542, 4
      %973 = vrot.lane.b32.xlu0 %v970, 80
      %v974 = vpop.permute.xlu0 %973
      %975 = vrot.lane.b32.xlu0 %v971, 80
      %v976 = vpop.permute.xlu0 %975
      %977 = vrot.lane.b32.xlu0 %v972, 80
      %v978 = vpop.permute.xlu0 %977
      %vm979 = vcmask 654336
      %v980 = vsel %vm979, %v974, %v976
      %v981 = vsel %vm979, %v976, %v978
      %vm984 = vcmask 1043456
      %v985 = vsel %vm984, %v197, %v763
      %v986 = vsel %vm984, %v198, %v764
      %v987 = vsel %vm984, %v777, %v794
      %v988 = vsel %vm984, %v778, %v795
      %v989 = vsel %vm984, %v808, %v825
      %v990 = vsel %vm984, %v809, %v826
      %v991 = vsel %vm984, %v839, %v856
      %v992 = vsel %vm984, %v840, %v857
      %v993 = vsel %vm984, %v870, %v887
      %v994 = vsel %vm984, %v871, %v888
      %v995 = vsel %vm984, %v901, %v918
      %v996 = vsel %vm984, %v902, %v919
      %v997 = vsel %vm984, %v932, %v949
      %v998 = vsel %vm984, %v933, %v950
      %v999 = vsel %vm984, %v963, %v980
      %v1000 = vsel %vm984, %v964, %v981
      %v1004 = vrot.slane %v586, 4
      %v1005 = vrot.slane %v587, 4
      %v1006 = vrot.slane %v588, 4
      %1007 = vrot.lane.b32.xlu0 %v1004, 127
      %v1008 = vpop.permute.xlu0 %1007
      %1009 = vrot.lane.b32.xlu0 %v1005, 127
      %v1010 = vpop.permute.xlu0 %1009
      %1011 = vrot.lane.b32.xlu0 %v1006, 127
      %v1012 = vpop.permute.xlu0 %1011
      %v1013 = vsel %vm762, %v1008, %v1010
      %v1014 = vsel %vm762, %v1010, %v1012
      %1021 = vrot.lane.b32.xlu0 %v609, 126
      %v1022 = vpop.permute.xlu0 %1021
      %1023 = vrot.lane.b32.xlu0 %v610, 126
      %v1024 = vpop.permute.xlu0 %1023
      %1025 = vrot.lane.b32.xlu0 %v611, 126
      %v1026 = vpop.permute.xlu0 %1025
      %v1027 = vsel %vm776, %v1022, %v1024
      %v1028 = vsel %vm776, %v1024, %v1026
      %v1035 = vrot.slane %v632, 4
      %v1036 = vrot.slane %v633, 4
      %v1037 = vrot.slane %v634, 4
      %1038 = vrot.lane.b32.xlu0 %v1035, 125
      %v1039 = vpop.permute.xlu0 %1038
      %1040 = vrot.lane.b32.xlu0 %v1036, 125
      %v1041 = vpop.permute.xlu0 %1040
      %1042 = vrot.lane.b32.xlu0 %v1037, 125
      %v1043 = vpop.permute.xlu0 %1042
      %v1044 = vsel %vm793, %v1039, %v1041
      %v1045 = vsel %vm793, %v1041, %v1043
      %1052 = vrot.lane.b32.xlu0 %v655, 113
      %v1053 = vpop.permute.xlu0 %1052
      %1054 = vrot.lane.b32.xlu0 %v656, 113
      %v1055 = vpop.permute.xlu0 %1054
      %1056 = vrot.lane.b32.xlu0 %v657, 113
      %v1057 = vpop.permute.xlu0 %1056
      %vm1058 = vcmask 924672
      %v1059 = vsel %vm1058, %v1053, %v1055
      %v1060 = vsel %vm1058, %v1055, %v1057
      %v1067 = vrot.slane %v678, 4
      %v1068 = vrot.slane %v679, 4
      %v1069 = vrot.slane %v680, 4
      %1070 = vrot.lane.b32.xlu0 %v1067, 112
      %v1071 = vpop.permute.xlu0 %1070
      %1072 = vrot.lane.b32.xlu0 %v1068, 112
      %v1073 = vpop.permute.xlu0 %1072
      %1074 = vrot.lane.b32.xlu0 %v1069, 112
      %v1075 = vpop.permute.xlu0 %1074
      %v1076 = vsel %vm824, %v1071, %v1073
      %v1077 = vsel %vm824, %v1073, %v1075
      %1084 = vrot.lane.b32.xlu0 %v701, 111
      %v1085 = vpop.permute.xlu0 %1084
      %1086 = vrot.lane.b32.xlu0 %v702, 111
      %v1087 = vpop.permute.xlu0 %1086
      %1088 = vrot.lane.b32.xlu0 %v703, 111
      %v1089 = vpop.permute.xlu0 %1088
      %v1090 = vsel %vm838, %v1085, %v1087
      %v1091 = vsel %vm838, %v1087, %v1089
      %v1098 = vrot.slane %v724, 4
      %v1099 = vrot.slane %v725, 4
      %v1100 = vrot.slane %v726, 4
      %1101 = vrot.lane.b32.xlu0 %v1098, 110
      %v1102 = vpop.permute.xlu0 %1101
      %1103 = vrot.lane.b32.xlu0 %v1099, 110
      %v1104 = vpop.permute.xlu0 %1103
      %1105 = vrot.lane.b32.xlu0 %v1100, 110
      %v1106 = vpop.permute.xlu0 %1105
      %v1107 = vsel %vm855, %v1102, %v1104
      %v1108 = vsel %vm855, %v1104, %v1106
      %1115 = vrot.lane.b32.xlu0 %v747, 109
      %v1116 = vpop.permute.xlu0 %1115
      %1117 = vrot.lane.b32.xlu0 %v748, 109
      %v1118 = vpop.permute.xlu0 %1117
      %1119 = vrot.lane.b32.xlu0 %v749, 109
      %v1120 = vpop.permute.xlu0 %1119
      %v1121 = vsel %vm869, %v1116, %v1118
      %v1122 = vsel %vm869, %v1118, %v1120
      %v1123 = vsel %vm984, %v563, %v1013
      %v1124 = vsel %vm984, %v564, %v1014
      %v1125 = vsel %vm984, %v565, %v1012
      %v1126 = vsel %vm984, %v1027, %v1044
      %v1127 = vsel %vm984, %v1028, %v1045
      %v1128 = vsel %vm984, %v1026, %v1043
      %v1129 = vsel %vm984, %v1059, %v1076
      %v1130 = vsel %vm984, %v1060, %v1077
      %v1131 = vsel %vm984, %v1057, %v1075
      %v1132 = vsel %vm984, %v1090, %v1107
      %v1133 = vsel %vm984, %v1091, %v1108
      %v1134 = vsel %vm984, %v1089, %v1106
      %1147 = vrot.lane.b32.xlu0 %v1123, 79
      %v1148 = vpop.permute.xlu0 %1147
      %1149 = vrot.lane.b32.xlu0 %v1124, 79
      %v1150 = vpop.permute.xlu0 %1149
      %1151 = vrot.lane.b32.xlu0 %v1125, 79
      %v1152 = vpop.permute.xlu0 %1151
      %1153 = vrot.lane.b32.xlu0 %v1126, 79
      %v1154 = vpop.permute.xlu0 %1153
      %1155 = vrot.lane.b32.xlu0 %v1127, 79
      %v1156 = vpop.permute.xlu0 %1155
      %1157 = vrot.lane.b32.xlu0 %v1128, 79
      %v1158 = vpop.permute.xlu0 %1157
      %1159 = vrot.lane.b32.xlu0 %v1129, 79
      %v1160 = vpop.permute.xlu0 %1159
      %1161 = vrot.lane.b32.xlu0 %v1130, 79
      %v1162 = vpop.permute.xlu0 %1161
      %1163 = vrot.lane.b32.xlu0 %v1131, 79
      %v1164 = vpop.permute.xlu0 %1163
      %1165 = vrot.lane.b32.xlu0 %v1132, 79
      %v1166 = vpop.permute.xlu0 %1165
      %1167 = vrot.lane.b32.xlu0 %v1133, 79
      %v1168 = vpop.permute.xlu0 %1167
      %1169 = vrot.lane.b32.xlu0 %v1134, 79
      %v1170 = vpop.permute.xlu0 %1169
      %1171 = vrot.lane.b32.xlu0 %v1121, 79
      %v1172 = vpop.permute.xlu0 %1171
      %1173 = vrot.lane.b32.xlu0 %v1122, 79
      %v1174 = vpop.permute.xlu0 %1173
      %1175 = vrot.lane.b32.xlu0 %v1120, 79
      %v1176 = vpop.permute.xlu0 %1175
      %vm1177 = vcmask 646144
      %v1178 = vsel %vm1177, %v1148, %v1150
      %v1179 = vsel %vm1177, %v1150, %v1152
      %v1180 = vsel %vm1177, %v1154, %v1156
      %v1181 = vsel %vm1177, %v1156, %v1158
      %v1182 = vsel %vm1177, %v1160, %v1162
      %v1183 = vsel %vm1177, %v1162, %v1164
      %v1184 = vsel %vm1177, %v1166, %v1168
      %v1185 = vsel %vm1177, %v1168, %v1170
      %v1186 = vsel %vm1177, %v1172, %v1174
      %v1187 = vsel %vm1177, %v1174, %v1176
      %v1196 = vld [vmem:[%s1] sm:$0xff]
      %vm1197 = vcmask 818176
      %v1199 = vsel %vm1197, %v1196, 0
      %v1201 = vsel %vm984, %v1186, 0
      %v1203 = vsel %vm984, %v1187, 0
      %1205 = vmatprep.subr.mxu0 0.0
      %1206 = vmatpush1.msra.mxu0 0.0
      %1207 = vmatprep.subr.mxu0 0.0
      %1208 = vmatpush1.msra.mxu0 0.0
      %1209 = vmatprep.subr.mxu0 0.0
      %1210 = vmatpush1.msra.mxu0 0.0
      %1211 = vmatprep.subr.mxu0 %v1203
      %1212 = vmatpush1.msra.mxu0 %v1201
      %1213 = vmatprep.subr.mxu0 %v1185
      %1214 = vmatpush1.msra.mxu0 %v1184
      %1215 = vmatprep.subr.mxu0 %v1183
      %1216 = vmatpush1.msra.mxu0 %v1182
      %1217 = vmatprep.subr.mxu0 %v1181
      %1218 = vmatpush1.msra.mxu0 %v1180
      %1219 = vmatprep.subr.mxu0 %v1179
      %1220 = vmatpush1.msra.mxu0 %v1178
      %1221 = vmatprep.subr.mxu0 %v1000
      %1222 = vmatpush1.msra.mxu0 %v999
      %1223 = vmatprep.subr.mxu0 %v998
      %1224 = vmatpush1.msra.mxu0 %v997
      %1225 = vmatprep.subr.mxu0 %v996
      %1226 = vmatpush1.msra.mxu0 %v995
      %1227 = vmatprep.subr.mxu0 %v994
      %1228 = vmatpush1.msra.mxu0 %v993
      %1229 = vmatprep.subr.mxu0 %v992
      %1230 = vmatpush1.msra.mxu0 %v991
      %1231 = vmatprep.subr.mxu0 %v990
      %1232 = vmatpush1.msra.mxu0 %v989
      %1233 = vmatprep.subr.mxu0 %v988
      %1234 = vmatpush1.msra.mxu0 %v987
      %1235 = vmatprep.subr.mxu0 %v986
      %1236 = vmatpush1.msra.mxu0 %v985
      %1237 = vmatprep.subr.mxu0 0.0
      %1238 = vmatpush2.msra.mxu0 0.0
      %1239 = vmatprep.subr.mxu0 0.0
      %1240 = vmatpush2.msra.mxu0 0.0
      %1241 = vmatprep.subr.mxu0 0.0
      %1242 = vmatpush2.msra.mxu0 0.0
      %1243 = vmatprep.subr.mxu0 0.0
      %1244 = vmatpush2.msra.mxu0 0.0
      %1245 = vmatprep.subr.mxu0 0.0
      %1246 = vmatpush2.msra.mxu0 0.0
      %1247 = vmatprep.subr.mxu0 0.0
      %1248 = vmatpush2.msra.mxu0 0.0
      %1249 = vmatprep.subr.mxu0 0.0
      %1250 = vmatpush2.msra.mxu0 0.0
      %1251 = vmatprep.subr.mxu0 0.0
      %1252 = vmatpush2.msra.mxu0 0.0
      %1253 = vmatprep.subr.mxu0 0.0
      %1254 = vmatpush2.msra.mxu0 0.0
      %1255 = vmatprep.subr.mxu0 0.0
      %1256 = vmatpush2.msra.mxu0 0.0
      %1257 = vmatprep.subr.mxu0 0.0
      %1258 = vmatpush2.msra.mxu0 0.0
      %1259 = vmatprep.subr.mxu0 0.0
      %1260 = vmatpush2.msra.mxu0 0.0
      %1261 = vmatprep.subr.mxu0 0.0
      %1262 = vmatpush2.msra.mxu0 0.0
      %1263 = vmatprep.subr.mxu0 0.0
      %1264 = vmatpush2.msra.mxu0 0.0
      %1265 = vmatprep.subr.mxu0 0.0
      %1266 = vmatpush2.msra.mxu0 0.0
      %1267 = vmatprep.subr.mxu0 0.0
      %1268 = vmatpush2.msra.mxu0 0.0
      %1269 = vmatprep.mubr.f32.mxu0 0.0
      %1270 = vmatmul.mubr.f32.gmra.mxu0 %v1199
      %v1271 = vpop.f32.mrf.mxu0
      %v1272 = vadd.f32 0.0, %v1271
      %v1273 = vpop.f32.mrf.mxu0
      %v1274 = vadd.f32 0.0, %v1273
      %1275 = vdwg.mxu0
      %1276 = vst [vmem:[%s170] sm:$0xff] %v1272
      %1277 = vst [vmem:[%s170 + $0x8] sm:$0xff] %v1274
      %p1278 = scmp.lt.s32.totalorder %s14, 1
      %s1279 = scalar_select %p1278, %s14, 1
      %s1280 = smul.addr %s1279, 2
      %s1281 = smul.addr %s1280, 8
      %s1282 = scalar_lea.vmem %s3, %s1281
      // Predicated region
      $region33: #{conv2d_5x5_forward.1} parent=31 // pred_check
        %p1283 = pneg %p100
      $region34: #{conv2d_5x5_forward.1} parent=31 // pred_check_branch
        %1285 = sbr.rel (%p1283) target = $region36
      $region35: #{conv2d_5x5_forward.1} parent=31 // pred_region
        _
      $region36: #{conv2d_5x5_forward.1} parent=31 // pred_fallthru
        _
    $region32: #{conv2d_5x5_forward.1} parent=5 // pred_fallthru
      _
    %p1286 = scmp.le.s32.totalorder 2, %s9
    // Predicated region
    $region37: #{conv2d_5x5_forward.1} parent=5 // pred_check
      %p1287 = pneg %p1286
    $region38: #{conv2d_5x5_forward.1} parent=5 // pred_check_branch
      %1289 = sbr.rel (%p1287) target = $region40
    $region39: #{conv2d_5x5_forward.1} parent=5 // pred_region
      %s1290 = ssub.s32 %s9, 2
      // Predicated region
      $region41: #{conv2d_5x5_forward.1} parent=39 // pred_check
        %p1291 = pneg %p106
      $region42: #{conv2d_5x5_forward.1} parent=39 // pred_check_branch
        %1293 = sbr.rel (%p1291) target = $region44
      $region43: #{conv2d_5x5_forward.1} parent=39 // pred_region
        %p1294 = scmp.lt.s32.totalorder %s15, 1
        %s1295 = scalar_select %p1294, %s15, 1
        %s1296 = smul.addr %s1295, 2
        %s1297 = smul.addr %s1296, 8
        %s1298 = scalar_lea.vmem %s3, %s1297
      $region44: #{conv2d_5x5_forward.1} parent=39 // pred_fallthru
        _
    $region40: #{conv2d_5x5_forward.1} parent=5 // pred_fallthru
      _
  $region6: #{conv2d_5x5_forward.1} parent=0 // loop_footer
    %s13 = sadd.s32 1, %s9
  $region7: #{conv2d_5x5_forward.1} parent=0 // loop_footer_branch
    %8 = sbr.rel target = $region3
  $region8: #{conv2d_5x5_forward.1} parent=0 // loop_exit
    _

</llo_original>
